<compile_context>
chip_gen: v7x
topology: tpu7x:2x2x1
jax: 0.10.0
libtpu: 0.0.40
codegen_flags: <defaults>
</compile_context>

<pallas_src>
import jax
import jax.numpy as jnp
from jax.experimental import pallas as pl
from jax.experimental.pallas import tpu as pltpu


# Conservative per-buffer tile budget: 2 arrays x 2 pipeline buffers x 2 MiB = 8 MiB,
# which fits v5e's 16 MiB default scoped VMEM and is far under v6e (32 MiB default)
# and v7x (64 MiB physical) limits.
_PER_BUFFER_BYTES = 2 * 1024 * 1024


def _copy_kernel(x_ref, o_ref):
    # Pure elementwise pass-through of the current VMEM tile.
    o_ref[...] = x_ref[...]


def tofp16_gpu_forward(x):
    """Identity forward (matches tofp16_gpu.forward). Rank-agnostic."""
    orig_shape = x.shape
    total = x.size
    if total == 0:
        return x

    # Lane-dense reshape: flatten and fold into (rows, cols) where cols is the
    # largest multiple of 128 (<= 1024) that divides the element count.  This
    # keeps stores unmasked (full 128-lane vst) and needs no padding.
    cols = 0
    for c in range(1024, 0, -128):
        if total % c == 0:
            cols = c
            break
    if cols == 0:
        # Element count not a multiple of 128: a kernel here would need a
        # pad -> copy -> slice round trip (3x HBM traffic for an identity),
        # so just return the input unchanged (exactly what the module does).
        return x

    rows = total // cols
    itemsize = jnp.dtype(x.dtype).itemsize

    # Largest row-tile (multiple of 8) under the per-buffer VMEM budget; if the
    # whole array already fits, use the full row extent (always a legal block).
    budget_rows = max(8, (_PER_BUFFER_BYTES // (cols * itemsize)) // 8 * 8)
    if rows <= budget_rows:
        tile_rows = rows
    else:
        tile_rows = budget_rows  # ragged last block handled by masked edge writes

    grid_r = pl.cdiv(rows, tile_rows)
    x2 = x.reshape(rows, cols)

    out2 = pl.pallas_call(
        _copy_kernel,
        out_shape=jax.ShapeDtypeStruct((rows, cols), x.dtype),
        grid=(grid_r,),
        in_specs=[pl.BlockSpec((tile_rows, cols), lambda i: (i, 0))],
        out_specs=pl.BlockSpec((tile_rows, cols), lambda i: (i, 0)),
        # Identity: let XLA alias the output onto the input buffer when possible
        # (no new HBM allocation; degenerates to a copy only if it can't donate).
        input_output_aliases={0: 0},
        compiler_params=pltpu.CompilerParams(
            # Parallel grid so v7x's two TensorCores both stream when grid_r > 1.
            dimension_semantics=("parallel",),
        ),
    )(x2)

    return out2.reshape(orig_shape)


if __name__ == "__main__":
    key = jax.random.PRNGKey(0)
    # NCHW input, consistent with the module being used in a conv pipeline.
    x = jax.random.normal(key, (2, 4, 16, 16), dtype=jnp.float32)

    fwd = jax.jit(tofp16_gpu_forward)
    y = fwd(x)
    jax.block_until_ready(y)

    assert y.shape == x.shape
    assert y.dtype == x.dtype
    assert bool(jnp.all(y == x))

    print("KERNEL_OK")
</pallas_src>

<mosaic_0001>
module attributes {stable_mosaic.version = 11 : i64} {
  func.func @_copy_kernel(%arg0: i32, %arg1: memref<2x1024xf32, #tpu.memory_space<vmem>>, %arg2: memref<2x1024xf32, #tpu.memory_space<vmem>>) attributes {dimension_semantics = [#tpu.dimension_semantics<parallel>], iteration_bounds = array<i64: 1>, scalar_prefetch = 0 : i64, scratch_operands = 0 : i64, tpu.core_type = #tpu.core_type<tc>, window_params = [{transform_indices = @transform_0, window_bounds = array<i64: 2, 1024>}, {transform_indices = @transform_1, window_bounds = array<i64: 2, 1024>}]} {
    %c0 = arith.constant 0 : index
    %c0_0 = arith.constant 0 : index
    %0 = vector.load %arg1[%c0, %c0_0] : memref<2x1024xf32, #tpu.memory_space<vmem>>, vector<2x1024xf32>
    %c0_1 = arith.constant 0 : index
    %c0_2 = arith.constant 0 : index
    %1 = vector.load %arg2[%c0_1, %c0_2] : memref<2x1024xf32, #tpu.memory_space<vmem>>, vector<2x1024xf32>
    tpu.vector_store %arg2[%c0_1, %c0_2], %0 {strides = array<i32>} : memref<2x1024xf32, #tpu.memory_space<vmem>>, vector<2x1024xf32>,
    return
  }
  func.func @transform_0(%arg0: i32) -> (i32, i32) {
    %c0_i32 = arith.constant 0 : i32
    %c0_i32_0 = arith.constant 0 : i32
    return %arg0, %c0_i32 : i32, i32
  }
  func.func @transform_1(%arg0: i32) -> (i32, i32) {
    %c0_i32 = arith.constant 0 : i32
    %c0_i32_0 = arith.constant 0 : i32
    return %arg0, %c0_i32 : i32, i32
  }
}

</mosaic_0001>

<llo_original>
// kernel: tofp16_gpu_forward.1
$region0: #{tofp16_gpu_forward.1}
  #allocation0 [shape = 'u32[]', space=smem, size = 0x4, offset = 0x4, fixed_abs, tag = 'smem constant byte address 0x4 - core index']
  #allocation1 [shape = 'u32[144,128]{1,0:T(1,128)}', space=vmem, size = 0x12000, scoped, tag = 'internal scratch']
  %s0 = inlined_call_operand.vmem [shape: f32[2,1024], index: 0, kind: input, shape index: {}, may-alias: {0,1}]
  %s1 = inlined_call_operand.vmem [shape: f32[2,1024], index: 1, kind: output, shape index: {}, may-alias: {0,1}]
  %s2 = sld [smem:[#allocation0]]
  $region14: #{tofp16_gpu_forward.1} parent=0
    _
  %s4 = ssub.s32 1, %s2
  %s5 = scalar_select 0, %s4, %s2
  // Predicated region
  $region2: #{tofp16_gpu_forward.1} parent=0 // pred_check
    _
  $region3: #{tofp16_gpu_forward.1} parent=0 // pred_check_branch
    %7 = sbr.rel (0) target = $region5
  $region4: #{tofp16_gpu_forward.1} parent=0 // pred_region
    _
  $region5: #{tofp16_gpu_forward.1} parent=0 // pred_fallthru
    _
  %v8 = vld [vmem:[%s0] sm:$0xff]
  %v9 = vld [vmem:[%s0 + $0x8] sm:$0xff]
  %10 = vst [vmem:[%s1] sm:$0xff] %v8
  %11 = vst [vmem:[%s1 + $0x8] sm:$0xff] %v9
  // Predicated region
  $region6: #{tofp16_gpu_forward.1} parent=0 // pred_check
    _
  $region7: #{tofp16_gpu_forward.1} parent=0 // pred_check_branch
    %13 = sbr.rel (0) target = $region9
  $region8: #{tofp16_gpu_forward.1} parent=0 // pred_region
    _
  $region9: #{tofp16_gpu_forward.1} parent=0 // pred_fallthru
    _
  // Predicated region
  $region10: #{tofp16_gpu_forward.1} parent=0 // pred_check
    _
  $region11: #{tofp16_gpu_forward.1} parent=0 // pred_check_branch
    %15 = sbr.rel (0) target = $region13
  $region12: #{tofp16_gpu_forward.1} parent=0 // pred_region
    _
  $region13: #{tofp16_gpu_forward.1} parent=0 // pred_fallthru
    _

</llo_original>
